<compile_context>
chip_gen: v6e
topology: v6e:2x2x1
jax: 0.10.0
libtpu: 0.0.40
codegen_flags: <defaults>
</compile_context>

<pallas_src>
import functools

import jax
import jax.numpy as jnp
from jax.experimental import pallas as pl
from jax.experimental.pallas import tpu as pltpu


# ----------------------------- Pallas kernel ------------------------------ #

def _make_cell_kernel(edge_inputs, out_nodes):
    """Build a fused whole-cell kernel for a static DAG description.

    Ref order: s0, s1, w_pre0, b_pre0, w_pre1, b_pre1,
               (w_node_k, b_node_k) * n_nodes, w_post, b_post, o_ref
    All tensors are channels-first: activations (C, tm), weights (Cout, K),
    betas (Cout, 1).  BN gamma is already folded into the weights.
    """
    n_nodes = len(edge_inputs)

    def kernel(*refs):
        s0_ref, s1_ref = refs[0], refs[1]
        w_pre0, b_pre0, w_pre1, b_pre1 = refs[2:6]
        node_refs = refs[6:6 + 2 * n_nodes]
        w_post, b_post = refs[6 + 2 * n_nodes], refs[7 + 2 * n_nodes]
        o_ref = refs[8 + 2 * n_nodes]

        def relu_conv_bn(x, w_ref, b_ref):
            # ReLU -> 1x1 conv (MXU) with BN gamma pre-folded, + summed beta.
            y = jnp.dot(w_ref[...], jnp.maximum(x, 0.0),
                        preferred_element_type=jnp.float32)
            return y + b_ref[...]                       # (Cout,1) bcast over lanes

        states = [
            relu_conv_bn(s0_ref[...], w_pre0, b_pre0),  # preprocess0
            relu_conv_bn(s1_ref[...], w_pre1, b_pre1),  # preprocess1
        ]
        for k, ins in enumerate(edge_inputs):
            w_ref, b_ref = node_refs[2 * k], node_refs[2 * k + 1]
            if len(ins):
                # Concat edge inputs along K (channel) axis: one fused matmul.
                x_cat = jnp.concatenate([states[j] for j in ins], axis=0)
                o = relu_conv_bn(x_cat, w_ref, b_ref)
            else:
                o = states[-1] + 0.0
            states.append(o)

        # post op ('proj_channels'): channel-concat of last `out_nodes` states.
        cat = jnp.concatenate(states[-out_nodes:], axis=0)
        o_ref[...] = relu_conv_bn(cat, w_post, b_post).astype(o_ref.dtype)

    return kernel


def _fold(p):
    """Fold BN gamma into conv weights, concat edges along K, pre-sum betas.

    p: {'w': (E, Cin, Cout), 'gamma': (E, 1, Cout), 'beta': (E, 1, Cout)}
    returns: W_folded (Cout, E*Cin), beta_sum (Cout, 1)
    """
    w = p["w"] * p["gamma"]                      # fold gamma (bcast over Cin)
    cout = w.shape[2]
    w_t = jnp.transpose(w, (2, 0, 1)).reshape(cout, -1)   # (Cout, E*Cin)
    beta = jnp.sum(p["beta"], axis=0).T                    # (Cout, 1)
    return w_t, beta


def cell_fused_call(s0_cm, s1_cm, folded, edge_inputs, out_nodes, *, tm=512):
    """One pallas_call for the whole cell; activations are (C, M) f32."""
    M = s0_cm.shape[1]
    tm = min(tm, M)
    assert M % tm == 0, "M must be divisible by the row tile"
    assert tm % 128 == 0 or tm == M, "lane tile must be 128-aligned"
    # NOTE(v7x): for large M pick tm so M//tm >= 2 to shard across both TCs.

    (w0, b0), (w1, b1), node_folded, (wp, bp) = folded
    cell_ch = wp.shape[0]

    operands = [s0_cm, s1_cm, w0, b0, w1, b1]
    for wn, bn in node_folded:
        operands += [wn, bn]
    operands += [wp, bp]

    def act_spec(c):
        return pl.BlockSpec((c, tm), lambda i: (0, i))

    def resident_spec(a):  # full-extent block, constant index -> DMA'd once
        return pl.BlockSpec(a.shape, lambda i: (0, 0))

    in_specs = [act_spec(s0_cm.shape[0]), act_spec(s1_cm.shape[0])]
    in_specs += [resident_spec(a) for a in operands[2:]]

    kernel = _make_cell_kernel(edge_inputs, out_nodes)

    return pl.pallas_call(
        kernel,
        out_shape=jax.ShapeDtypeStruct((cell_ch, M), s0_cm.dtype),
        grid_spec=pltpu.PrefetchScalarGridSpec(
            num_scalar_prefetch=0,
            grid=(M // tm,),
            in_specs=in_specs,
            out_specs=pl.BlockSpec((cell_ch, tm), lambda i: (0, i)),
        ),
        compiler_params=pltpu.CompilerParams(
            dimension_semantics=("parallel",)),
    )(*operands)


# ----------------------------- Cell (JAX glue) ----------------------------- #

def _relu_conv_bn_params(key, e, cin, cout):
    """Deterministic params for E stacked ReLU->Conv1x1->BN(eval) ops."""
    kw, kg, kb = jax.random.split(key, 3)
    w = jax.random.normal(kw, (e, cin, cout), jnp.float32) * (1.0 / jnp.sqrt(cin))
    gamma = 1.0 + 0.1 * jax.random.normal(kg, (e, 1, cout), jnp.float32)
    beta = 0.1 * jax.random.normal(kb, (e, 1, cout), jnp.float32)
    return {"w": w, "gamma": gamma, "beta": beta}


def make_cell_params(key, s0_ch, s1_ch, node_ch, cell_ch, edge_inputs, out_nodes):
    keys = jax.random.split(key, 3 + len(edge_inputs))
    return {
        "pre0": _relu_conv_bn_params(keys[0], 1, s0_ch, node_ch),
        "pre1": _relu_conv_bn_params(keys[1], 1, s1_ch, node_ch),
        "nodes": [
            _relu_conv_bn_params(keys[2 + i], max(1, len(ins)), node_ch, node_ch)
            for i, ins in enumerate(edge_inputs)
        ],
        "post": _relu_conv_bn_params(keys[-1], 1, node_ch * out_nodes, cell_ch),
    }


def _nchw_to_cm(x):
    n, c, h, w = x.shape
    return jnp.transpose(x, (1, 0, 2, 3)).reshape(c, n * h * w), (n, h, w)


def _cm_to_nchw(x, nhw):
    n, h, w = nhw
    c = x.shape[0]
    return jnp.transpose(x.reshape(c, n, h, w), (1, 0, 2, 3))


def cell_forward(params, s0_nchw, s1_nchw, edge_inputs, out_nodes, *, tm=512):
    s0, nhw = _nchw_to_cm(s0_nchw)
    s1, _ = _nchw_to_cm(s1_nchw)
    folded = (
        _fold(params["pre0"]),
        _fold(params["pre1"]),
        [_fold(p) for p in params["nodes"]],
        _fold(params["post"]),
    )
    out = cell_fused_call(s0, s1, folded, edge_inputs, out_nodes, tm=tm)
    return _cm_to_nchw(out, nhw)


# Pure-JAX reference for correctness checking (unfolded params, NHWC-flat).
def cell_forward_ref(params, s0_nchw, s1_nchw, edge_inputs, out_nodes):
    def op(x, w, g, b):  # x: (M, Cin), w: (Cin, Cout)
        return jnp.maximum(x, 0.0) @ w * g + b

    def nchw_to_mc(x):
        n, c, h, w = x.shape
        return jnp.transpose(x, (0, 2, 3, 1)).reshape(n * h * w, c), (n, h, w)

    s0, nhw = nchw_to_mc(s0_nchw)
    s1, _ = nchw_to_mc(s1_nchw)
    p0, p1 = params["pre0"], params["pre1"]
    s0 = op(s0, p0["w"][0], p0["gamma"][0], p0["beta"][0])
    s1 = op(s1, p1["w"][0], p1["gamma"][0], p1["beta"][0])
    states = [s0, s1]
    for node_idx, ins in enumerate(edge_inputs):
        pn = params["nodes"][node_idx]
        if len(ins):
            o = sum(op(states[j], pn["w"][k], pn["gamma"][k], pn["beta"][k])
                    for k, j in enumerate(ins))
        else:
            o = states[-1] + 0.0
        states.append(o)
    cat = jnp.concatenate(states[-out_nodes:], axis=-1)
    pp = params["post"]
    out = op(cat, pp["w"][0], pp["gamma"][0], pp["beta"][0])
    n, h, w = nhw
    return jnp.transpose(out.reshape(n, h, w, -1), (0, 3, 1, 2))


# ---------------------------------- main ----------------------------------- #

if __name__ == "__main__":
    key = jax.random.PRNGKey(0)
    k_s0, k_s1, k_p = jax.random.split(key, 3)

    # Small shapes: batch=2, spatial=8x8 (M = 2*8*8 = 128, one lane-dense tile),
    # s0_ch=8, s1_ch=16, node_ch=16, cell_ch=32.
    N, H, W = 2, 8, 8
    S0_CH, S1_CH, NODE_CH, CELL_CH = 8, 16, 16, 32
    OUT_NODES = 4
    # Node i may only draw from states[0 .. i+1].
    EDGE_INPUTS = ((0, 1), (1, 2), (0, 3), (2, 4))

    s0 = jax.random.normal(k_s0, (N, S0_CH, H, W), jnp.float32)   # NCHW
    s1 = jax.random.normal(k_s1, (N, S1_CH, H, W), jnp.float32)   # NCHW

    params = make_cell_params(k_p, S0_CH, S1_CH, NODE_CH, CELL_CH,
                              EDGE_INPUTS, OUT_NODES)

    fwd = jax.jit(functools.partial(cell_forward,
                                    edge_inputs=EDGE_INPUTS,
                                    out_nodes=OUT_NODES))
    out = fwd(params, s0, s1)
    out = jax.block_until_ready(out)

    ref = cell_forward_ref(params, s0, s1, EDGE_INPUTS, OUT_NODES)
    assert out.shape == (N, CELL_CH, H, W), out.shape
    # BN folding / K-concat change rounding order slightly; keep a small margin.
    assert jnp.allclose(out, ref, atol=1e-3, rtol=1e-3), "mismatch vs reference"

    print("KERNEL_OK")
</pallas_src>

<mosaic_0001>
module attributes {stable_mosaic.version = 11 : i64} {
  func.func @kernel(%arg0: i32, %arg1: memref<8x128xf32, #tpu.memory_space<vmem>>, %arg2: memref<16x128xf32, #tpu.memory_space<vmem>>, %arg3: memref<16x8xf32, #tpu.memory_space<vmem>>, %arg4: memref<16x1xf32, #tpu.memory_space<vmem>>, %arg5: memref<16x16xf32, #tpu.memory_space<vmem>>, %arg6: memref<16x1xf32, #tpu.memory_space<vmem>>, %arg7: memref<16x32xf32, #tpu.memory_space<vmem>>, %arg8: memref<16x1xf32, #tpu.memory_space<vmem>>, %arg9: memref<16x32xf32, #tpu.memory_space<vmem>>, %arg10: memref<16x1xf32, #tpu.memory_space<vmem>>, %arg11: memref<16x32xf32, #tpu.memory_space<vmem>>, %arg12: memref<16x1xf32, #tpu.memory_space<vmem>>, %arg13: memref<16x32xf32, #tpu.memory_space<vmem>>, %arg14: memref<16x1xf32, #tpu.memory_space<vmem>>, %arg15: memref<32x64xf32, #tpu.memory_space<vmem>>, %arg16: memref<32x1xf32, #tpu.memory_space<vmem>>, %arg17: memref<32x128xf32, #tpu.memory_space<vmem>>) attributes {dimension_semantics = [#tpu.dimension_semantics<parallel>], iteration_bounds = array<i64: 1>, scalar_prefetch = 0 : i64, scratch_operands = 0 : i64, tpu.core_type = #tpu.core_type<tc>, window_params = [{transform_indices = @transform_0, window_bounds = array<i64: 8, 128>}, {transform_indices = @transform_1, window_bounds = array<i64: 16, 128>}, {pipeline_mode = #tpu.pipeline_mode<synchronous>, transform_indices = @transform_2, window_bounds = array<i64: 16, 8>}, {pipeline_mode = #tpu.pipeline_mode<synchronous>, transform_indices = @transform_3, window_bounds = array<i64: 16, 1>}, {pipeline_mode = #tpu.pipeline_mode<synchronous>, transform_indices = @transform_4, window_bounds = array<i64: 16, 16>}, {pipeline_mode = #tpu.pipeline_mode<synchronous>, transform_indices = @transform_5, window_bounds = array<i64: 16, 1>}, {pipeline_mode = #tpu.pipeline_mode<synchronous>, transform_indices = @transform_6, window_bounds = array<i64: 16, 32>}, {pipeline_mode = #tpu.pipeline_mode<synchronous>, transform_indices = @transform_7, window_bounds = array<i64: 16, 1>}, {pipeline_mode = #tpu.pipeline_mode<synchronous>, transform_indices = @transform_8, window_bounds = array<i64: 16, 32>}, {pipeline_mode = #tpu.pipeline_mode<synchronous>, transform_indices = @transform_9, window_bounds = array<i64: 16, 1>}, {pipeline_mode = #tpu.pipeline_mode<synchronous>, transform_indices = @transform_10, window_bounds = array<i64: 16, 32>}, {pipeline_mode = #tpu.pipeline_mode<synchronous>, transform_indices = @transform_11, window_bounds = array<i64: 16, 1>}, {pipeline_mode = #tpu.pipeline_mode<synchronous>, transform_indices = @transform_12, window_bounds = array<i64: 16, 32>}, {pipeline_mode = #tpu.pipeline_mode<synchronous>, transform_indices = @transform_13, window_bounds = array<i64: 16, 1>}, {pipeline_mode = #tpu.pipeline_mode<synchronous>, transform_indices = @transform_14, window_bounds = array<i64: 32, 64>}, {pipeline_mode = #tpu.pipeline_mode<synchronous>, transform_indices = @transform_15, window_bounds = array<i64: 32, 1>}, {transform_indices = @transform_16, window_bounds = array<i64: 32, 128>}]} {
    %c0 = arith.constant 0 : index
    %c0_0 = arith.constant 0 : index
    %0 = vector.load %arg1[%c0, %c0_0] : memref<8x128xf32, #tpu.memory_space<vmem>>, vector<8x128xf32>
    %c0_1 = arith.constant 0 : index
    %c0_2 = arith.constant 0 : index
    %1 = vector.load %arg3[%c0_1, %c0_2] : memref<16x8xf32, #tpu.memory_space<vmem>>, vector<16x8xf32>
    %cst = arith.constant 0.000000e+00 : f32
    %2 = vector.broadcast %cst : f32 to vector<8x128xf32>
    %3 = arith.maximumf %0, %2 : vector<8x128xf32>
    %cst_3 = arith.constant dense<0.000000e+00> : vector<16x128xf32>
    %4 = tpu.matmul %1, %3, %cst_3 {dimension_numbers = #tpu.dot_dimension_numbers<[1], [0], [0], [1], [0, 0, 1, 1], [], []>} : vector<16x8xf32>, vector<8x128xf32>, vector<16x128xf32> -> vector<16x128xf32>
    %c0_4 = arith.constant 0 : index
    %c0_5 = arith.constant 0 : index
    %5 = vector.load %arg4[%c0_4, %c0_5] : memref<16x1xf32, #tpu.memory_space<vmem>>, vector<16x1xf32>
    %6 = vector.broadcast %5 : vector<16x1xf32> to vector<16x128xf32>
    %7 = arith.addf %4, %6 : vector<16x128xf32>
    %c0_6 = arith.constant 0 : index
    %c0_7 = arith.constant 0 : index
    %8 = vector.load %arg2[%c0_6, %c0_7] : memref<16x128xf32, #tpu.memory_space<vmem>>, vector<16x128xf32>
    %c0_8 = arith.constant 0 : index
    %c0_9 = arith.constant 0 : index
    %9 = vector.load %arg5[%c0_8, %c0_9] : memref<16x16xf32, #tpu.memory_space<vmem>>, vector<16x16xf32>
    %cst_10 = arith.constant 0.000000e+00 : f32
    %10 = vector.broadcast %cst_10 : f32 to vector<16x128xf32>
    %11 = arith.maximumf %8, %10 : vector<16x128xf32>
    %cst_11 = arith.constant dense<0.000000e+00> : vector<16x128xf32>
    %12 = tpu.matmul %9, %11, %cst_11 {dimension_numbers = #tpu.dot_dimension_numbers<[1], [0], [0], [1], [0, 0, 1, 1], [], []>} : vector<16x16xf32>, vector<16x128xf32>, vector<16x128xf32> -> vector<16x128xf32>
    %c0_12 = arith.constant 0 : index
    %c0_13 = arith.constant 0 : index
    %13 = vector.load %arg6[%c0_12, %c0_13] : memref<16x1xf32, #tpu.memory_space<vmem>>, vector<16x1xf32>
    %14 = vector.broadcast %13 : vector<16x1xf32> to vector<16x128xf32>
    %15 = arith.addf %12, %14 : vector<16x128xf32>
    %16 = tpu.concatenate %7, %15 in 0 : vector<16x128xf32>, vector<16x128xf32> -> vector<32x128xf32>
    %c0_14 = arith.constant 0 : index
    %c0_15 = arith.constant 0 : index
    %17 = vector.load %arg7[%c0_14, %c0_15] : memref<16x32xf32, #tpu.memory_space<vmem>>, vector<16x32xf32>
    %cst_16 = arith.constant 0.000000e+00 : f32
    %18 = vector.broadcast %cst_16 : f32 to vector<32x128xf32>
    %19 = arith.maximumf %16, %18 : vector<32x128xf32>
    %cst_17 = arith.constant dense<0.000000e+00> : vector<16x128xf32>
    %20 = tpu.matmul %17, %19, %cst_17 {dimension_numbers = #tpu.dot_dimension_numbers<[1], [0], [0], [1], [0, 0, 1, 1], [], []>} : vector<16x32xf32>, vector<32x128xf32>, vector<16x128xf32> -> vector<16x128xf32>
    %c0_18 = arith.constant 0 : index
    %c0_19 = arith.constant 0 : index
    %21 = vector.load %arg8[%c0_18, %c0_19] : memref<16x1xf32, #tpu.memory_space<vmem>>, vector<16x1xf32>
    %22 = vector.broadcast %21 : vector<16x1xf32> to vector<16x128xf32>
    %23 = arith.addf %20, %22 : vector<16x128xf32>
    %24 = tpu.concatenate %15, %23 in 0 : vector<16x128xf32>, vector<16x128xf32> -> vector<32x128xf32>
    %c0_20 = arith.constant 0 : index
    %c0_21 = arith.constant 0 : index
    %25 = vector.load %arg9[%c0_20, %c0_21] : memref<16x32xf32, #tpu.memory_space<vmem>>, vector<16x32xf32>
    %cst_22 = arith.constant 0.000000e+00 : f32
    %26 = vector.broadcast %cst_22 : f32 to vector<32x128xf32>
    %27 = arith.maximumf %24, %26 : vector<32x128xf32>
    %cst_23 = arith.constant dense<0.000000e+00> : vector<16x128xf32>
    %28 = tpu.matmul %25, %27, %cst_23 {dimension_numbers = #tpu.dot_dimension_numbers<[1], [0], [0], [1], [0, 0, 1, 1], [], []>} : vector<16x32xf32>, vector<32x128xf32>, vector<16x128xf32> -> vector<16x128xf32>
    %c0_24 = arith.constant 0 : index
    %c0_25 = arith.constant 0 : index
    %29 = vector.load %arg10[%c0_24, %c0_25] : memref<16x1xf32, #tpu.memory_space<vmem>>, vector<16x1xf32>
    %30 = vector.broadcast %29 : vector<16x1xf32> to vector<16x128xf32>
    %31 = arith.addf %28, %30 : vector<16x128xf32>
    %32 = tpu.concatenate %7, %31 in 0 : vector<16x128xf32>, vector<16x128xf32> -> vector<32x128xf32>
    %c0_26 = arith.constant 0 : index
    %c0_27 = arith.constant 0 : index
    %33 = vector.load %arg11[%c0_26, %c0_27] : memref<16x32xf32, #tpu.memory_space<vmem>>, vector<16x32xf32>
    %cst_28 = arith.constant 0.000000e+00 : f32
    %34 = vector.broadcast %cst_28 : f32 to vector<32x128xf32>
    %35 = arith.maximumf %32, %34 : vector<32x128xf32>
    %cst_29 = arith.constant dense<0.000000e+00> : vector<16x128xf32>
    %36 = tpu.matmul %33, %35, %cst_29 {dimension_numbers = #tpu.dot_dimension_numbers<[1], [0], [0], [1], [0, 0, 1, 1], [], []>} : vector<16x32xf32>, vector<32x128xf32>, vector<16x128xf32> -> vector<16x128xf32>
    %c0_30 = arith.constant 0 : index
    %c0_31 = arith.constant 0 : index
    %37 = vector.load %arg12[%c0_30, %c0_31] : memref<16x1xf32, #tpu.memory_space<vmem>>, vector<16x1xf32>
    %38 = vector.broadcast %37 : vector<16x1xf32> to vector<16x128xf32>
    %39 = arith.addf %36, %38 : vector<16x128xf32>
    %40 = tpu.concatenate %23, %39 in 0 : vector<16x128xf32>, vector<16x128xf32> -> vector<32x128xf32>
    %c0_32 = arith.constant 0 : index
    %c0_33 = arith.constant 0 : index
    %41 = vector.load %arg13[%c0_32, %c0_33] : memref<16x32xf32, #tpu.memory_space<vmem>>, vector<16x32xf32>
    %cst_34 = arith.constant 0.000000e+00 : f32
    %42 = vector.broadcast %cst_34 : f32 to vector<32x128xf32>
    %43 = arith.maximumf %40, %42 : vector<32x128xf32>
    %cst_35 = arith.constant dense<0.000000e+00> : vector<16x128xf32>
    %44 = tpu.matmul %41, %43, %cst_35 {dimension_numbers = #tpu.dot_dimension_numbers<[1], [0], [0], [1], [0, 0, 1, 1], [], []>} : vector<16x32xf32>, vector<32x128xf32>, vector<16x128xf32> -> vector<16x128xf32>
    %c0_36 = arith.constant 0 : index
    %c0_37 = arith.constant 0 : index
    %45 = vector.load %arg14[%c0_36, %c0_37] : memref<16x1xf32, #tpu.memory_space<vmem>>, vector<16x1xf32>
    %46 = vector.broadcast %45 : vector<16x1xf32> to vector<16x128xf32>
    %47 = arith.addf %44, %46 : vector<16x128xf32>
    %48 = tpu.concatenate %23, %31, %39, %47 in 0 : vector<16x128xf32>, vector<16x128xf32>, vector<16x128xf32>, vector<16x128xf32> -> vector<64x128xf32>
    %c0_38 = arith.constant 0 : index
    %c0_39 = arith.constant 0 : index
    %49 = vector.load %arg15[%c0_38, %c0_39] : memref<32x64xf32, #tpu.memory_space<vmem>>, vector<32x64xf32>
    %cst_40 = arith.constant 0.000000e+00 : f32
    %50 = vector.broadcast %cst_40 : f32 to vector<64x128xf32>
    %51 = arith.maximumf %48, %50 : vector<64x128xf32>
    %cst_41 = arith.constant dense<0.000000e+00> : vector<32x128xf32>
    %52 = tpu.matmul %49, %51, %cst_41 {dimension_numbers = #tpu.dot_dimension_numbers<[1], [0], [0], [1], [0, 0, 1, 1], [], []>} : vector<32x64xf32>, vector<64x128xf32>, vector<32x128xf32> -> vector<32x128xf32>
    %c0_42 = arith.constant 0 : index
    %c0_43 = arith.constant 0 : index
    %53 = vector.load %arg16[%c0_42, %c0_43] : memref<32x1xf32, #tpu.memory_space<vmem>>, vector<32x1xf32>
    %54 = vector.broadcast %53 : vector<32x1xf32> to vector<32x128xf32>
    %55 = arith.addf %52, %54 : vector<32x128xf32>
    %c0_44 = arith.constant 0 : index
    %c0_45 = arith.constant 0 : index
    %56 = vector.load %arg17[%c0_44, %c0_45] : memref<32x128xf32, #tpu.memory_space<vmem>>, vector<32x128xf32>
    tpu.vector_store %arg17[%c0_44, %c0_45], %55 {strides = array<i32>} : memref<32x128xf32, #tpu.memory_space<vmem>>, vector<32x128xf32>,
    return
  }
  func.func @transform_0(%arg0: i32) -> (i32, i32) {
    %c0_i32 = arith.constant 0 : i32
    %c0_i32_0 = arith.constant 0 : i32
    return %c0_i32, %arg0 : i32, i32
  }
  func.func @transform_1(%arg0: i32) -> (i32, i32) {
    %c0_i32 = arith.constant 0 : i32
    %c0_i32_0 = arith.constant 0 : i32
    return %c0_i32, %arg0 : i32, i32
  }
  func.func @transform_2(%arg0: i32) -> (i32, i32) {
    %c0_i32 = arith.constant 0 : i32
    %c0_i32_0 = arith.constant 0 : i32
    %c0_i32_1 = arith.constant 0 : i32
    return %c0_i32, %c0_i32_0 : i32, i32
  }
  func.func @transform_3(%arg0: i32) -> (i32, i32) {
    %c0_i32 = arith.constant 0 : i32
    %c0_i32_0 = arith.constant 0 : i32
    %c0_i32_1 = arith.constant 0 : i32
    return %c0_i32, %c0_i32_0 : i32, i32
  }
  func.func @transform_4(%arg0: i32) -> (i32, i32) {
    %c0_i32 = arith.constant 0 : i32
    %c0_i32_0 = arith.constant 0 : i32
    %c0_i32_1 = arith.constant 0 : i32
    return %c0_i32, %c0_i32_0 : i32, i32
  }
  func.func @transform_5(%arg0: i32) -> (i32, i32) {
    %c0_i32 = arith.constant 0 : i32
    %c0_i32_0 = arith.constant 0 : i32
    %c0_i32_1 = arith.constant 0 : i32
    return %c0_i32, %c0_i32_0 : i32, i32
  }
  func.func @transform_6(%arg0: i32) -> (i32, i32) {
    %c0_i32 = arith.constant 0 : i32
    %c0_i32_0 = arith.constant 0 : i32
    %c0_i32_1 = arith.constant 0 : i32
    return %c0_i32, %c0_i32_0 : i32, i32
  }
  func.func @transform_7(%arg0: i32) -> (i32, i32) {
    %c0_i32 = arith.constant 0 : i32
    %c0_i32_0 = arith.constant 0 : i32
    %c0_i32_1 = arith.constant 0 : i32
    return %c0_i32, %c0_i32_0 : i32, i32
  }
  func.func @transform_8(%arg0: i32) -> (i32, i32) {
    %c0_i32 = arith.constant 0 : i32
    %c0_i32_0 = arith.constant 0 : i32
    %c0_i32_1 = arith.constant 0 : i32
    return %c0_i32, %c0_i32_0 : i32, i32
  }
  func.func @transform_9(%arg0: i32) -> (i32, i32) {
    %c0_i32 = arith.constant 0 : i32
    %c0_i32_0 = arith.constant 0 : i32
    %c0_i32_1 = arith.constant 0 : i32
    return %c0_i32, %c0_i32_0 : i32, i32
  }
  func.func @transform_10(%arg0: i32) -> (i32, i32) {
    %c0_i32 = arith.constant 0 : i32
    %c0_i32_0 = arith.constant 0 : i32
    %c0_i32_1 = arith.constant 0 : i32
    return %c0_i32, %c0_i32_0 : i32, i32
  }
  func.func @transform_11(%arg0: i32) -> (i32, i32) {
    %c0_i32 = arith.constant 0 : i32
    %c0_i32_0 = arith.constant 0 : i32
    %c0_i32_1 = arith.constant 0 : i32
    return %c0_i32, %c0_i32_0 : i32, i32
  }
  func.func @transform_12(%arg0: i32) -> (i32, i32) {
    %c0_i32 = arith.constant 0 : i32
    %c0_i32_0 = arith.constant 0 : i32
    %c0_i32_1 = arith.constant 0 : i32
    return %c0_i32, %c0_i32_0 : i32, i32
  }
  func.func @transform_13(%arg0: i32) -> (i32, i32) {
    %c0_i32 = arith.constant 0 : i32
    %c0_i32_0 = arith.constant 0 : i32
    %c0_i32_1 = arith.constant 0 : i32
    return %c0_i32, %c0_i32_0 : i32, i32
  }
  func.func @transform_14(%arg0: i32) -> (i32, i32) {
    %c0_i32 = arith.constant 0 : i32
    %c0_i32_0 = arith.constant 0 : i32
    %c0_i32_1 = arith.constant 0 : i32
    return %c0_i32, %c0_i32_0 : i32, i32
  }
  func.func @transform_15(%arg0: i32) -> (i32, i32) {
    %c0_i32 = arith.constant 0 : i32
    %c0_i32_0 = arith.constant 0 : i32
    %c0_i32_1 = arith.constant 0 : i32
    return %c0_i32, %c0_i32_0 : i32, i32
  }
  func.func @transform_16(%arg0: i32) -> (i32, i32) {
    %c0_i32 = arith.constant 0 : i32
    %c0_i32_0 = arith.constant 0 : i32
    return %c0_i32, %arg0 : i32, i32
  }
}

</mosaic_0001>

<llo_original>
// kernel: cell_forward.1
$region0: #{cell_forward.1}
  #allocation0 [shape = 'u32[]', space=smem, size = 0x4, offset = 0x4, fixed_abs, tag = 'smem constant byte address 0x4 - core index']
  #allocation1 [shape = 'u32[144,128]{1,0:T(1,128)}', space=vmem, size = 0x12000, scoped, tag = 'internal scratch']
  %s0 = inlined_call_operand.vmem [shape: f32[8,128], index: 0, kind: input, shape index: {}]
  %s1 = inlined_call_operand.vmem [shape: f32[16,128], index: 1, kind: input, shape index: {}]
  %s2 = inlined_call_operand.vmem [shape: f32[16,8], index: 2, kind: input, shape index: {}]
  %s3 = inlined_call_operand.vmem [shape: f32[16,1], index: 3, kind: input, shape index: {}]
  %s4 = inlined_call_operand.vmem [shape: f32[16,16], index: 4, kind: input, shape index: {}]
  %s5 = inlined_call_operand.vmem [shape: f32[16,1], index: 5, kind: input, shape index: {}]
  %s6 = inlined_call_operand.vmem [shape: f32[16,32], index: 6, kind: input, shape index: {}]
  %s7 = inlined_call_operand.vmem [shape: f32[16,1], index: 7, kind: input, shape index: {}]
  %s8 = inlined_call_operand.vmem [shape: f32[16,32], index: 8, kind: input, shape index: {}]
  %s9 = inlined_call_operand.vmem [shape: f32[16,1], index: 9, kind: input, shape index: {}]
  %s10 = inlined_call_operand.vmem [shape: f32[16,32], index: 10, kind: input, shape index: {}]
  %s11 = inlined_call_operand.vmem [shape: f32[16,1], index: 11, kind: input, shape index: {}]
  %s12 = inlined_call_operand.vmem [shape: f32[16,32], index: 12, kind: input, shape index: {}]
  %s13 = inlined_call_operand.vmem [shape: f32[16,1], index: 13, kind: input, shape index: {}]
  %s14 = inlined_call_operand.vmem [shape: f32[32,64], index: 14, kind: input, shape index: {}]
  %s15 = inlined_call_operand.vmem [shape: f32[32,1], index: 15, kind: input, shape index: {}]
  %s16 = inlined_call_operand.vmem [shape: f32[32,128], index: 16, kind: output, shape index: {}]
  %s17 = sld [smem:[#allocation0]]
  $region74: #{cell_forward.1} parent=0
    _
  %s19 = ssub.s32 1, %s17
  %s20 = scalar_select 0, %s19, %s17
  // Predicated region
  $region2: #{cell_forward.1} parent=0 // pred_check
    _
  $region3: #{cell_forward.1} parent=0 // pred_check_branch
    %22 = sbr.rel (0) target = $region5
  $region4: #{cell_forward.1} parent=0 // pred_region
    _
  $region5: #{cell_forward.1} parent=0 // pred_fallthru
    _
  // Predicated region
  $region6: #{cell_forward.1} parent=0 // pred_check
    _
  $region7: #{cell_forward.1} parent=0 // pred_check_branch
    %24 = sbr.rel (0) target = $region9
  $region8: #{cell_forward.1} parent=0 // pred_region
    _
  $region9: #{cell_forward.1} parent=0 // pred_fallthru
    _
  // Predicated region
  $region10: #{cell_forward.1} parent=0 // pred_check
    _
  $region11: #{cell_forward.1} parent=0 // pred_check_branch
    %26 = sbr.rel (0) target = $region13
  $region12: #{cell_forward.1} parent=0 // pred_region
    _
  $region13: #{cell_forward.1} parent=0 // pred_fallthru
    _
  // Predicated region
  $region14: #{cell_forward.1} parent=0 // pred_check
    _
  $region15: #{cell_forward.1} parent=0 // pred_check_branch
    %28 = sbr.rel (0) target = $region17
  $region16: #{cell_forward.1} parent=0 // pred_region
    _
  $region17: #{cell_forward.1} parent=0 // pred_fallthru
    _
  // Predicated region
  $region18: #{cell_forward.1} parent=0 // pred_check
    _
  $region19: #{cell_forward.1} parent=0 // pred_check_branch
    %30 = sbr.rel (0) target = $region21
  $region20: #{cell_forward.1} parent=0 // pred_region
    _
  $region21: #{cell_forward.1} parent=0 // pred_fallthru
    _
  // Predicated region
  $region22: #{cell_forward.1} parent=0 // pred_check
    _
  $region23: #{cell_forward.1} parent=0 // pred_check_branch
    %32 = sbr.rel (0) target = $region25
  $region24: #{cell_forward.1} parent=0 // pred_region
    _
  $region25: #{cell_forward.1} parent=0 // pred_fallthru
    _
  // Predicated region
  $region26: #{cell_forward.1} parent=0 // pred_check
    _
  $region27: #{cell_forward.1} parent=0 // pred_check_branch
    %34 = sbr.rel (0) target = $region29
  $region28: #{cell_forward.1} parent=0 // pred_region
    _
  $region29: #{cell_forward.1} parent=0 // pred_fallthru
    _
  // Predicated region
  $region30: #{cell_forward.1} parent=0 // pred_check
    _
  $region31: #{cell_forward.1} parent=0 // pred_check_branch
    %36 = sbr.rel (0) target = $region33
  $region32: #{cell_forward.1} parent=0 // pred_region
    _
  $region33: #{cell_forward.1} parent=0 // pred_fallthru
    _
  // Predicated region
  $region34: #{cell_forward.1} parent=0 // pred_check
    _
  $region35: #{cell_forward.1} parent=0 // pred_check_branch
    %38 = sbr.rel (0) target = $region37
  $region36: #{cell_forward.1} parent=0 // pred_region
    _
  $region37: #{cell_forward.1} parent=0 // pred_fallthru
    _
  // Predicated region
  $region38: #{cell_forward.1} parent=0 // pred_check
    _
  $region39: #{cell_forward.1} parent=0 // pred_check_branch
    %40 = sbr.rel (0) target = $region41
  $region40: #{cell_forward.1} parent=0 // pred_region
    _
  $region41: #{cell_forward.1} parent=0 // pred_fallthru
    _
  // Predicated region
  $region42: #{cell_forward.1} parent=0 // pred_check
    _
  $region43: #{cell_forward.1} parent=0 // pred_check_branch
    %42 = sbr.rel (0) target = $region45
  $region44: #{cell_forward.1} parent=0 // pred_region
    _
  $region45: #{cell_forward.1} parent=0 // pred_fallthru
    _
  // Predicated region
  $region46: #{cell_forward.1} parent=0 // pred_check
    _
  $region47: #{cell_forward.1} parent=0 // pred_check_branch
    %44 = sbr.rel (0) target = $region49
  $region48: #{cell_forward.1} parent=0 // pred_region
    _
  $region49: #{cell_forward.1} parent=0 // pred_fallthru
    _
  // Predicated region
  $region50: #{cell_forward.1} parent=0 // pred_check
    _
  $region51: #{cell_forward.1} parent=0 // pred_check_branch
    %46 = sbr.rel (0) target = $region53
  $region52: #{cell_forward.1} parent=0 // pred_region
    _
  $region53: #{cell_forward.1} parent=0 // pred_fallthru
    _
  // Predicated region
  $region54: #{cell_forward.1} parent=0 // pred_check
    _
  $region55: #{cell_forward.1} parent=0 // pred_check_branch
    %48 = sbr.rel (0) target = $region57
  $region56: #{cell_forward.1} parent=0 // pred_region
    _
  $region57: #{cell_forward.1} parent=0 // pred_fallthru
    _
  // Predicated region
  $region58: #{cell_forward.1} parent=0 // pred_check
    _
  $region59: #{cell_forward.1} parent=0 // pred_check_branch
    %50 = sbr.rel (0) target = $region61
  $region60: #{cell_forward.1} parent=0 // pred_region
    _
  $region61: #{cell_forward.1} parent=0 // pred_fallthru
    _
  // Predicated region
  $region62: #{cell_forward.1} parent=0 // pred_check
    _
  $region63: #{cell_forward.1} parent=0 // pred_check_branch
    %52 = sbr.rel (0) target = $region65
  $region64: #{cell_forward.1} parent=0 // pred_region
    _
  $region65: #{cell_forward.1} parent=0 // pred_fallthru
    _
  %v53 = vld [vmem:[%s0] sm:$0xff]
  %v54 = vld [vmem:[%s2] sm:$0xff]
  %v55 = vld [vmem:[%s2 + $0x8] sm:$0xff]
  %v56 = vmax.f32 %v53, 0.0
  %v57 = vld [vmem:[%s3] sm:$0xff]
  %v58 = vld [vmem:[%s3 + $0x8] sm:$0xff]
  %60 = vset.pattern.permute.xlu0 0
  %61 = vperm.xlu0 %60, %v57
  %v62 = vpop.permute.xlu0 %61
  %65 = vset.pattern.permute.xlu0 0
  %66 = vperm.xlu0 %65, %v58
  %v67 = vpop.permute.xlu0 %66
  %vm69 = vcmask 64512
  %v71 = vsel %vm69, %v54, 0
  %v74 = vsel %vm69, %v55, 0
  %76 = vmatprep.subr.mxu0 0.0
  %77 = vmatpush1.msra.mxu0 0.0
  %78 = vmatprep.subr.mxu0 0.0
  %79 = vmatpush1.msra.mxu0 0.0
  %80 = vmatprep.subr.mxu0 0.0
  %81 = vmatpush1.msra.mxu0 0.0
  %82 = vmatprep.subr.mxu0 0.0
  %83 = vmatpush1.msra.mxu0 0.0
  %84 = vmatprep.subr.mxu0 0.0
  %85 = vmatpush1.msra.mxu0 0.0
  %86 = vmatprep.subr.mxu0 0.0
  %87 = vmatpush1.msra.mxu0 0.0
  %88 = vmatprep.subr.mxu0 0.0
  %89 = vmatpush1.msra.mxu0 0.0
  %90 = vmatprep.subr.mxu0 0.0
  %91 = vmatpush1.msra.mxu0 0.0
  %92 = vmatprep.subr.mxu0 0.0
  %93 = vmatpush1.msra.mxu0 0.0
  %94 = vmatprep.subr.mxu0 0.0
  %95 = vmatpush1.msra.mxu0 0.0
  %96 = vmatprep.subr.mxu0 0.0
  %97 = vmatpush1.msra.mxu0 0.0
  %98 = vmatprep.subr.mxu0 0.0
  %99 = vmatpush1.msra.mxu0 0.0
  %100 = vmatprep.subr.mxu0 0.0
  %101 = vmatpush1.msra.mxu0 0.0
  %102 = vmatprep.subr.mxu0 0.0
  %103 = vmatpush1.msra.mxu0 0.0
  %104 = vmatprep.subr.mxu0 0.0
  %105 = vmatpush1.msra.mxu0 0.0
  %106 = vmatprep.subr.mxu0 0.0
  %107 = vmatpush1.msra.mxu0 %v56
  %108 = vmatprep.subr.mxu0 0.0
  %109 = vmatpush2.msra.mxu0 0.0
  %110 = vmatprep.subr.mxu0 0.0
  %111 = vmatpush2.msra.mxu0 0.0
  %112 = vmatprep.subr.mxu0 0.0
  %113 = vmatpush2.msra.mxu0 0.0
  %114 = vmatprep.subr.mxu0 0.0
  %115 = vmatpush2.msra.mxu0 0.0
  %116 = vmatprep.subr.mxu0 0.0
  %117 = vmatpush2.msra.mxu0 0.0
  %118 = vmatprep.subr.mxu0 0.0
  %119 = vmatpush2.msra.mxu0 0.0
  %120 = vmatprep.subr.mxu0 0.0
  %121 = vmatpush2.msra.mxu0 0.0
  %122 = vmatprep.subr.mxu0 0.0
  %123 = vmatpush2.msra.mxu0 0.0
  %124 = vmatprep.subr.mxu0 0.0
  %125 = vmatpush2.msra.mxu0 0.0
  %126 = vmatprep.subr.mxu0 0.0
  %127 = vmatpush2.msra.mxu0 0.0
  %128 = vmatprep.subr.mxu0 0.0
  %129 = vmatpush2.msra.mxu0 0.0
  %130 = vmatprep.subr.mxu0 0.0
  %131 = vmatpush2.msra.mxu0 0.0
  %132 = vmatprep.subr.mxu0 0.0
  %133 = vmatpush2.msra.mxu0 0.0
  %134 = vmatprep.subr.mxu0 0.0
  %135 = vmatpush2.msra.mxu0 0.0
  %136 = vmatprep.subr.mxu0 0.0
  %137 = vmatpush2.msra.mxu0 0.0
  %138 = vmatprep.subr.mxu0 0.0
  %139 = vmatpush2.msra.mxu0 0.0
  %140 = vmatprep.mubr.f32.mxu0 0.0
  %141 = vmatmul.mubr.f32.gmra.mxu0 %v71
  %v142 = vpop.f32.mrf.mxu0
  %v143 = vadd.f32 %v62, %v142
  %v144 = vpop.f32.mrf.mxu0
  %145 = vmatprep.mubr.f32.mxu0 0.0
  %146 = vmatmul.mubr.f32.gmra.mxu0 %v74
  %v147 = vpop.f32.mrf.mxu0
  %v148 = vadd.f32 %v67, %v147
  %v149 = vpop.f32.mrf.mxu0
  %150 = vdwg.mxu0
  %v151 = vld [vmem:[%s1] sm:$0xff]
  %v152 = vld [vmem:[%s1 + $0x8] sm:$0xff]
  %v153 = vld [vmem:[%s4] sm:$0xff]
  %v154 = vld [vmem:[%s4 + $0x8] sm:$0xff]
  %v155 = vmax.f32 %v151, 0.0
  %v156 = vmax.f32 %v152, 0.0
  %v157 = vld [vmem:[%s5] sm:$0xff]
  %v158 = vld [vmem:[%s5 + $0x8] sm:$0xff]
  %160 = vset.pattern.permute.xlu0 0
  %161 = vperm.xlu0 %160, %v157
  %v162 = vpop.permute.xlu0 %161
  %165 = vset.pattern.permute.xlu0 0
  %166 = vperm.xlu0 %165, %v158
  %v167 = vpop.permute.xlu0 %166
  %vm169 = vcmask 130048
  %v171 = vsel %vm169, %v153, 0
  %v174 = vsel %vm169, %v154, 0
  %176 = vmatprep.subr.mxu0 0.0
  %177 = vmatpush1.msra.mxu0 0.0
  %178 = vmatprep.subr.mxu0 0.0
  %179 = vmatpush1.msra.mxu0 0.0
  %180 = vmatprep.subr.mxu0 0.0
  %181 = vmatpush1.msra.mxu0 0.0
  %182 = vmatprep.subr.mxu0 0.0
  %183 = vmatpush1.msra.mxu0 0.0
  %184 = vmatprep.subr.mxu0 0.0
  %185 = vmatpush1.msra.mxu0 0.0
  %186 = vmatprep.subr.mxu0 0.0
  %187 = vmatpush1.msra.mxu0 0.0
  %188 = vmatprep.subr.mxu0 0.0
  %189 = vmatpush1.msra.mxu0 0.0
  %190 = vmatprep.subr.mxu0 0.0
  %191 = vmatpush1.msra.mxu0 0.0
  %192 = vmatprep.subr.mxu0 0.0
  %193 = vmatpush1.msra.mxu0 0.0
  %194 = vmatprep.subr.mxu0 0.0
  %195 = vmatpush1.msra.mxu0 0.0
  %196 = vmatprep.subr.mxu0 0.0
  %197 = vmatpush1.msra.mxu0 0.0
  %198 = vmatprep.subr.mxu0 0.0
  %199 = vmatpush1.msra.mxu0 0.0
  %200 = vmatprep.subr.mxu0 0.0
  %201 = vmatpush1.msra.mxu0 0.0
  %202 = vmatprep.subr.mxu0 0.0
  %203 = vmatpush1.msra.mxu0 0.0
  %204 = vmatprep.subr.mxu0 0.0
  %205 = vmatpush1.msra.mxu0 %v156
  %206 = vmatprep.subr.mxu0 0.0
  %207 = vmatpush1.msra.mxu0 %v155
  %208 = vmatprep.subr.mxu0 0.0
  %209 = vmatpush2.msra.mxu0 0.0
  %210 = vmatprep.subr.mxu0 0.0
  %211 = vmatpush2.msra.mxu0 0.0
  %212 = vmatprep.subr.mxu0 0.0
  %213 = vmatpush2.msra.mxu0 0.0
  %214 = vmatprep.subr.mxu0 0.0
  %215 = vmatpush2.msra.mxu0 0.0
  %216 = vmatprep.subr.mxu0 0.0
  %217 = vmatpush2.msra.mxu0 0.0
  %218 = vmatprep.subr.mxu0 0.0
  %219 = vmatpush2.msra.mxu0 0.0
  %220 = vmatprep.subr.mxu0 0.0
  %221 = vmatpush2.msra.mxu0 0.0
  %222 = vmatprep.subr.mxu0 0.0
  %223 = vmatpush2.msra.mxu0 0.0
  %224 = vmatprep.subr.mxu0 0.0
  %225 = vmatpush2.msra.mxu0 0.0
  %226 = vmatprep.subr.mxu0 0.0
  %227 = vmatpush2.msra.mxu0 0.0
  %228 = vmatprep.subr.mxu0 0.0
  %229 = vmatpush2.msra.mxu0 0.0
  %230 = vmatprep.subr.mxu0 0.0
  %231 = vmatpush2.msra.mxu0 0.0
  %232 = vmatprep.subr.mxu0 0.0
  %233 = vmatpush2.msra.mxu0 0.0
  %234 = vmatprep.subr.mxu0 0.0
  %235 = vmatpush2.msra.mxu0 0.0
  %236 = vmatprep.subr.mxu0 0.0
  %237 = vmatpush2.msra.mxu0 0.0
  %238 = vmatprep.subr.mxu0 0.0
  %239 = vmatpush2.msra.mxu0 0.0
  %240 = vmatprep.mubr.f32.mxu0 0.0
  %241 = vmatmul.mubr.f32.gmra.mxu0 %v171
  %v242 = vpop.f32.mrf.mxu0
  %v243 = vadd.f32 %v162, %v242
  %v244 = vpop.f32.mrf.mxu0
  %245 = vmatprep.mubr.f32.mxu0 0.0
  %246 = vmatmul.mubr.f32.gmra.mxu0 %v174
  %v247 = vpop.f32.mrf.mxu0
  %v248 = vadd.f32 %v167, %v247
  %v249 = vpop.f32.mrf.mxu0
  %250 = vdwg.mxu0
  %v251 = vld [vmem:[%s6] sm:$0xff]
  %v252 = vld [vmem:[%s6 + $0x8] sm:$0xff]
  %v253 = vmax.f32 %v143, 0.0
  %v254 = vmax.f32 %v148, 0.0
  %v255 = vmax.f32 %v243, 0.0
  %v256 = vmax.f32 %v248, 0.0
  %v257 = vld [vmem:[%s7] sm:$0xff]
  %v258 = vld [vmem:[%s7 + $0x8] sm:$0xff]
  %260 = vset.pattern.permute.xlu0 0
  %261 = vperm.xlu0 %260, %v257
  %v262 = vpop.permute.xlu0 %261
  %265 = vset.pattern.permute.xlu0 0
  %266 = vperm.xlu0 %265, %v258
  %v267 = vpop.permute.xlu0 %266
  %vm269 = vcmask 261120
  %v271 = vsel %vm269, %v251, 0
  %v274 = vsel %vm269, %v252, 0
  %276 = vmatprep.subr.mxu0 0.0
  %277 = vmatpush1.msra.mxu0 0.0
  %278 = vmatprep.subr.mxu0 0.0
  %279 = vmatpush1.msra.mxu0 0.0
  %280 = vmatprep.subr.mxu0 0.0
  %281 = vmatpush1.msra.mxu0 0.0
  %282 = vmatprep.subr.mxu0 0.0
  %283 = vmatpush1.msra.mxu0 0.0
  %284 = vmatprep.subr.mxu0 0.0
  %285 = vmatpush1.msra.mxu0 0.0
  %286 = vmatprep.subr.mxu0 0.0
  %287 = vmatpush1.msra.mxu0 0.0
  %288 = vmatprep.subr.mxu0 0.0
  %289 = vmatpush1.msra.mxu0 0.0
  %290 = vmatprep.subr.mxu0 0.0
  %291 = vmatpush1.msra.mxu0 0.0
  %292 = vmatprep.subr.mxu0 0.0
  %293 = vmatpush1.msra.mxu0 0.0
  %294 = vmatprep.subr.mxu0 0.0
  %295 = vmatpush1.msra.mxu0 0.0
  %296 = vmatprep.subr.mxu0 0.0
  %297 = vmatpush1.msra.mxu0 0.0
  %298 = vmatprep.subr.mxu0 0.0
  %299 = vmatpush1.msra.mxu0 0.0
  %300 = vmatprep.subr.mxu0 0.0
  %301 = vmatpush1.msra.mxu0 %v256
  %302 = vmatprep.subr.mxu0 0.0
  %303 = vmatpush1.msra.mxu0 %v255
  %304 = vmatprep.subr.mxu0 0.0
  %305 = vmatpush1.msra.mxu0 %v254
  %306 = vmatprep.subr.mxu0 0.0
  %307 = vmatpush1.msra.mxu0 %v253
  %308 = vmatprep.subr.mxu0 0.0
  %309 = vmatpush2.msra.mxu0 0.0
  %310 = vmatprep.subr.mxu0 0.0
  %311 = vmatpush2.msra.mxu0 0.0
  %312 = vmatprep.subr.mxu0 0.0
  %313 = vmatpush2.msra.mxu0 0.0
  %314 = vmatprep.subr.mxu0 0.0
  %315 = vmatpush2.msra.mxu0 0.0
  %316 = vmatprep.subr.mxu0 0.0
  %317 = vmatpush2.msra.mxu0 0.0
  %318 = vmatprep.subr.mxu0 0.0
  %319 = vmatpush2.msra.mxu0 0.0
  %320 = vmatprep.subr.mxu0 0.0
  %321 = vmatpush2.msra.mxu0 0.0
  %322 = vmatprep.subr.mxu0 0.0
  %323 = vmatpush2.msra.mxu0 0.0
  %324 = vmatprep.subr.mxu0 0.0
  %325 = vmatpush2.msra.mxu0 0.0
  %326 = vmatprep.subr.mxu0 0.0
  %327 = vmatpush2.msra.mxu0 0.0
  %328 = vmatprep.subr.mxu0 0.0
  %329 = vmatpush2.msra.mxu0 0.0
  %330 = vmatprep.subr.mxu0 0.0
  %331 = vmatpush2.msra.mxu0 0.0
  %332 = vmatprep.subr.mxu0 0.0
  %333 = vmatpush2.msra.mxu0 0.0
  %334 = vmatprep.subr.mxu0 0.0
  %335 = vmatpush2.msra.mxu0 0.0
  %336 = vmatprep.subr.mxu0 0.0
  %337 = vmatpush2.msra.mxu0 0.0
  %338 = vmatprep.subr.mxu0 0.0
  %339 = vmatpush2.msra.mxu0 0.0
  %340 = vmatprep.mubr.f32.mxu0 0.0
  %341 = vmatmul.mubr.f32.gmra.mxu0 %v271
  %v342 = vpop.f32.mrf.mxu0
  %v343 = vadd.f32 %v262, %v342
  %v344 = vpop.f32.mrf.mxu0
  %345 = vmatprep.mubr.f32.mxu0 0.0
  %346 = vmatmul.mubr.f32.gmra.mxu0 %v274
  %v347 = vpop.f32.mrf.mxu0
  %v348 = vadd.f32 %v267, %v347
  %v349 = vpop.f32.mrf.mxu0
  %350 = vdwg.mxu0
  %v351 = vld [vmem:[%s8] sm:$0xff]
  %v352 = vld [vmem:[%s8 + $0x8] sm:$0xff]
  %v353 = vmax.f32 %v343, 0.0
  %v354 = vmax.f32 %v348, 0.0
  %v355 = vld [vmem:[%s9] sm:$0xff]
  %v356 = vld [vmem:[%s9 + $0x8] sm:$0xff]
  %358 = vset.pattern.permute.xlu0 0
  %359 = vperm.xlu0 %358, %v355
  %v360 = vpop.permute.xlu0 %359
  %363 = vset.pattern.permute.xlu0 0
  %364 = vperm.xlu0 %363, %v356
  %v365 = vpop.permute.xlu0 %364
  %v368 = vsel %vm269, %v351, 0
  %v371 = vsel %vm269, %v352, 0
  %373 = vmatprep.subr.mxu0 0.0
  %374 = vmatpush1.msra.mxu0 0.0
  %375 = vmatprep.subr.mxu0 0.0
  %376 = vmatpush1.msra.mxu0 0.0
  %377 = vmatprep.subr.mxu0 0.0
  %378 = vmatpush1.msra.mxu0 0.0
  %379 = vmatprep.subr.mxu0 0.0
  %380 = vmatpush1.msra.mxu0 0.0
  %381 = vmatprep.subr.mxu0 0.0
  %382 = vmatpush1.msra.mxu0 0.0
  %383 = vmatprep.subr.mxu0 0.0
  %384 = vmatpush1.msra.mxu0 0.0
  %385 = vmatprep.subr.mxu0 0.0
  %386 = vmatpush1.msra.mxu0 0.0
  %387 = vmatprep.subr.mxu0 0.0
  %388 = vmatpush1.msra.mxu0 0.0
  %389 = vmatprep.subr.mxu0 0.0
  %390 = vmatpush1.msra.mxu0 0.0
  %391 = vmatprep.subr.mxu0 0.0
  %392 = vmatpush1.msra.mxu0 0.0
  %393 = vmatprep.subr.mxu0 0.0
  %394 = vmatpush1.msra.mxu0 0.0
  %395 = vmatprep.subr.mxu0 0.0
  %396 = vmatpush1.msra.mxu0 0.0
  %397 = vmatprep.subr.mxu0 0.0
  %398 = vmatpush1.msra.mxu0 %v354
  %399 = vmatprep.subr.mxu0 0.0
  %400 = vmatpush1.msra.mxu0 %v353
  %401 = vmatprep.subr.mxu0 0.0
  %402 = vmatpush1.msra.mxu0 %v256
  %403 = vmatprep.subr.mxu0 0.0
  %404 = vmatpush1.msra.mxu0 %v255
  %405 = vmatprep.subr.mxu0 0.0
  %406 = vmatpush2.msra.mxu0 0.0
  %407 = vmatprep.subr.mxu0 0.0
  %408 = vmatpush2.msra.mxu0 0.0
  %409 = vmatprep.subr.mxu0 0.0
  %410 = vmatpush2.msra.mxu0 0.0
  %411 = vmatprep.subr.mxu0 0.0
  %412 = vmatpush2.msra.mxu0 0.0
  %413 = vmatprep.subr.mxu0 0.0
  %414 = vmatpush2.msra.mxu0 0.0
  %415 = vmatprep.subr.mxu0 0.0
  %416 = vmatpush2.msra.mxu0 0.0
  %417 = vmatprep.subr.mxu0 0.0
  %418 = vmatpush2.msra.mxu0 0.0
  %419 = vmatprep.subr.mxu0 0.0
  %420 = vmatpush2.msra.mxu0 0.0
  %421 = vmatprep.subr.mxu0 0.0
  %422 = vmatpush2.msra.mxu0 0.0
  %423 = vmatprep.subr.mxu0 0.0
  %424 = vmatpush2.msra.mxu0 0.0
  %425 = vmatprep.subr.mxu0 0.0
  %426 = vmatpush2.msra.mxu0 0.0
  %427 = vmatprep.subr.mxu0 0.0
  %428 = vmatpush2.msra.mxu0 0.0
  %429 = vmatprep.subr.mxu0 0.0
  %430 = vmatpush2.msra.mxu0 0.0
  %431 = vmatprep.subr.mxu0 0.0
  %432 = vmatpush2.msra.mxu0 0.0
  %433 = vmatprep.subr.mxu0 0.0
  %434 = vmatpush2.msra.mxu0 0.0
  %435 = vmatprep.subr.mxu0 0.0
  %436 = vmatpush2.msra.mxu0 0.0
  %437 = vmatprep.mubr.f32.mxu0 0.0
  %438 = vmatmul.mubr.f32.gmra.mxu0 %v368
  %v439 = vpop.f32.mrf.mxu0
  %v440 = vadd.f32 %v360, %v439
  %v441 = vpop.f32.mrf.mxu0
  %442 = vmatprep.mubr.f32.mxu0 0.0
  %443 = vmatmul.mubr.f32.gmra.mxu0 %v371
  %v444 = vpop.f32.mrf.mxu0
  %v445 = vadd.f32 %v365, %v444
  %v446 = vpop.f32.mrf.mxu0
  %447 = vdwg.mxu0
  %v448 = vld [vmem:[%s10] sm:$0xff]
  %v449 = vld [vmem:[%s10 + $0x8] sm:$0xff]
  %v450 = vmax.f32 %v440, 0.0
  %v451 = vmax.f32 %v445, 0.0
  %v452 = vld [vmem:[%s11] sm:$0xff]
  %v453 = vld [vmem:[%s11 + $0x8] sm:$0xff]
  %455 = vset.pattern.permute.xlu0 0
  %456 = vperm.xlu0 %455, %v452
  %v457 = vpop.permute.xlu0 %456
  %460 = vset.pattern.permute.xlu0 0
  %461 = vperm.xlu0 %460, %v453
  %v462 = vpop.permute.xlu0 %461
  %v465 = vsel %vm269, %v448, 0
  %v468 = vsel %vm269, %v449, 0
  %470 = vmatprep.subr.mxu0 0.0
  %471 = vmatpush1.msra.mxu0 0.0
  %472 = vmatprep.subr.mxu0 0.0
  %473 = vmatpush1.msra.mxu0 0.0
  %474 = vmatprep.subr.mxu0 0.0
  %475 = vmatpush1.msra.mxu0 0.0
  %476 = vmatprep.subr.mxu0 0.0
  %477 = vmatpush1.msra.mxu0 0.0
  %478 = vmatprep.subr.mxu0 0.0
  %479 = vmatpush1.msra.mxu0 0.0
  %480 = vmatprep.subr.mxu0 0.0
  %481 = vmatpush1.msra.mxu0 0.0
  %482 = vmatprep.subr.mxu0 0.0
  %483 = vmatpush1.msra.mxu0 0.0
  %484 = vmatprep.subr.mxu0 0.0
  %485 = vmatpush1.msra.mxu0 0.0
  %486 = vmatprep.subr.mxu0 0.0
  %487 = vmatpush1.msra.mxu0 0.0
  %488 = vmatprep.subr.mxu0 0.0
  %489 = vmatpush1.msra.mxu0 0.0
  %490 = vmatprep.subr.mxu0 0.0
  %491 = vmatpush1.msra.mxu0 0.0
  %492 = vmatprep.subr.mxu0 0.0
  %493 = vmatpush1.msra.mxu0 0.0
  %494 = vmatprep.subr.mxu0 0.0
  %495 = vmatpush1.msra.mxu0 %v451
  %496 = vmatprep.subr.mxu0 0.0
  %497 = vmatpush1.msra.mxu0 %v450
  %498 = vmatprep.subr.mxu0 0.0
  %499 = vmatpush1.msra.mxu0 %v254
  %500 = vmatprep.subr.mxu0 0.0
  %501 = vmatpush1.msra.mxu0 %v253
  %502 = vmatprep.subr.mxu0 0.0
  %503 = vmatpush2.msra.mxu0 0.0
  %504 = vmatprep.subr.mxu0 0.0
  %505 = vmatpush2.msra.mxu0 0.0
  %506 = vmatprep.subr.mxu0 0.0
  %507 = vmatpush2.msra.mxu0 0.0
  %508 = vmatprep.subr.mxu0 0.0
  %509 = vmatpush2.msra.mxu0 0.0
  %510 = vmatprep.subr.mxu0 0.0
  %511 = vmatpush2.msra.mxu0 0.0
  %512 = vmatprep.subr.mxu0 0.0
  %513 = vmatpush2.msra.mxu0 0.0
  %514 = vmatprep.subr.mxu0 0.0
  %515 = vmatpush2.msra.mxu0 0.0
  %516 = vmatprep.subr.mxu0 0.0
  %517 = vmatpush2.msra.mxu0 0.0
  %518 = vmatprep.subr.mxu0 0.0
  %519 = vmatpush2.msra.mxu0 0.0
  %520 = vmatprep.subr.mxu0 0.0
  %521 = vmatpush2.msra.mxu0 0.0
  %522 = vmatprep.subr.mxu0 0.0
  %523 = vmatpush2.msra.mxu0 0.0
  %524 = vmatprep.subr.mxu0 0.0
  %525 = vmatpush2.msra.mxu0 0.0
  %526 = vmatprep.subr.mxu0 0.0
  %527 = vmatpush2.msra.mxu0 0.0
  %528 = vmatprep.subr.mxu0 0.0
  %529 = vmatpush2.msra.mxu0 0.0
  %530 = vmatprep.subr.mxu0 0.0
  %531 = vmatpush2.msra.mxu0 0.0
  %532 = vmatprep.subr.mxu0 0.0
  %533 = vmatpush2.msra.mxu0 0.0
  %534 = vmatprep.mubr.f32.mxu0 0.0
  %535 = vmatmul.mubr.f32.gmra.mxu0 %v465
  %v536 = vpop.f32.mrf.mxu0
  %v537 = vadd.f32 %v457, %v536
  %v538 = vpop.f32.mrf.mxu0
  %539 = vmatprep.mubr.f32.mxu0 0.0
  %540 = vmatmul.mubr.f32.gmra.mxu0 %v468
  %v541 = vpop.f32.mrf.mxu0
  %v542 = vadd.f32 %v462, %v541
  %v543 = vpop.f32.mrf.mxu0
  %544 = vdwg.mxu0
  %v545 = vld [vmem:[%s12] sm:$0xff]
  %v546 = vld [vmem:[%s12 + $0x8] sm:$0xff]
  %v547 = vmax.f32 %v537, 0.0
  %v548 = vmax.f32 %v542, 0.0
  %v549 = vld [vmem:[%s13] sm:$0xff]
  %v550 = vld [vmem:[%s13 + $0x8] sm:$0xff]
  %552 = vset.pattern.permute.xlu0 0
  %553 = vperm.xlu0 %552, %v549
  %v554 = vpop.permute.xlu0 %553
  %557 = vset.pattern.permute.xlu0 0
  %558 = vperm.xlu0 %557, %v550
  %v559 = vpop.permute.xlu0 %558
  %v562 = vsel %vm269, %v545, 0
  %v565 = vsel %vm269, %v546, 0
  %567 = vmatprep.subr.mxu0 0.0
  %568 = vmatpush1.msra.mxu0 0.0
  %569 = vmatprep.subr.mxu0 0.0
  %570 = vmatpush1.msra.mxu0 0.0
  %571 = vmatprep.subr.mxu0 0.0
  %572 = vmatpush1.msra.mxu0 0.0
  %573 = vmatprep.subr.mxu0 0.0
  %574 = vmatpush1.msra.mxu0 0.0
  %575 = vmatprep.subr.mxu0 0.0
  %576 = vmatpush1.msra.mxu0 0.0
  %577 = vmatprep.subr.mxu0 0.0
  %578 = vmatpush1.msra.mxu0 0.0
  %579 = vmatprep.subr.mxu0 0.0
  %580 = vmatpush1.msra.mxu0 0.0
  %581 = vmatprep.subr.mxu0 0.0
  %582 = vmatpush1.msra.mxu0 0.0
  %583 = vmatprep.subr.mxu0 0.0
  %584 = vmatpush1.msra.mxu0 0.0
  %585 = vmatprep.subr.mxu0 0.0
  %586 = vmatpush1.msra.mxu0 0.0
  %587 = vmatprep.subr.mxu0 0.0
  %588 = vmatpush1.msra.mxu0 0.0
  %589 = vmatprep.subr.mxu0 0.0
  %590 = vmatpush1.msra.mxu0 0.0
  %591 = vmatprep.subr.mxu0 0.0
  %592 = vmatpush1.msra.mxu0 %v548
  %593 = vmatprep.subr.mxu0 0.0
  %594 = vmatpush1.msra.mxu0 %v547
  %595 = vmatprep.subr.mxu0 0.0
  %596 = vmatpush1.msra.mxu0 %v354
  %597 = vmatprep.subr.mxu0 0.0
  %598 = vmatpush1.msra.mxu0 %v353
  %599 = vmatprep.subr.mxu0 0.0
  %600 = vmatpush2.msra.mxu0 0.0
  %601 = vmatprep.subr.mxu0 0.0
  %602 = vmatpush2.msra.mxu0 0.0
  %603 = vmatprep.subr.mxu0 0.0
  %604 = vmatpush2.msra.mxu0 0.0
  %605 = vmatprep.subr.mxu0 0.0
  %606 = vmatpush2.msra.mxu0 0.0
  %607 = vmatprep.subr.mxu0 0.0
  %608 = vmatpush2.msra.mxu0 0.0
  %609 = vmatprep.subr.mxu0 0.0
  %610 = vmatpush2.msra.mxu0 0.0
  %611 = vmatprep.subr.mxu0 0.0
  %612 = vmatpush2.msra.mxu0 0.0
  %613 = vmatprep.subr.mxu0 0.0
  %614 = vmatpush2.msra.mxu0 0.0
  %615 = vmatprep.subr.mxu0 0.0
  %616 = vmatpush2.msra.mxu0 0.0
  %617 = vmatprep.subr.mxu0 0.0
  %618 = vmatpush2.msra.mxu0 0.0
  %619 = vmatprep.subr.mxu0 0.0
  %620 = vmatpush2.msra.mxu0 0.0
  %621 = vmatprep.subr.mxu0 0.0
  %622 = vmatpush2.msra.mxu0 0.0
  %623 = vmatprep.subr.mxu0 0.0
  %624 = vmatpush2.msra.mxu0 0.0
  %625 = vmatprep.subr.mxu0 0.0
  %626 = vmatpush2.msra.mxu0 0.0
  %627 = vmatprep.subr.mxu0 0.0
  %628 = vmatpush2.msra.mxu0 0.0
  %629 = vmatprep.subr.mxu0 0.0
  %630 = vmatpush2.msra.mxu0 0.0
  %631 = vmatprep.mubr.f32.mxu0 0.0
  %632 = vmatmul.mubr.f32.gmra.mxu0 %v562
  %v633 = vpop.f32.mrf.mxu0
  %v634 = vadd.f32 %v554, %v633
  %v635 = vpop.f32.mrf.mxu0
  %636 = vmatprep.mubr.f32.mxu0 0.0
  %637 = vmatmul.mubr.f32.gmra.mxu0 %v565
  %v638 = vpop.f32.mrf.mxu0
  %v639 = vadd.f32 %v559, %v638
  %v640 = vpop.f32.mrf.mxu0
  %641 = vdwg.mxu0
  %v642 = vld [vmem:[%s14] sm:$0xff]
  %v643 = vld [vmem:[%s14 + $0x8] sm:$0xff]
  %v644 = vld [vmem:[%s14 + $0x10] sm:$0xff]
  %v645 = vld [vmem:[%s14 + $0x18] sm:$0xff]
  %v646 = vmax.f32 %v634, 0.0
  %v647 = vmax.f32 %v639, 0.0
  %v648 = vld [vmem:[%s15] sm:$0xff]
  %v649 = vld [vmem:[%s15 + $0x8] sm:$0xff]
  %v650 = vld [vmem:[%s15 + $0x10] sm:$0xff]
  %v651 = vld [vmem:[%s15 + $0x18] sm:$0xff]
  %653 = vset.pattern.permute.xlu0 0
  %654 = vperm.xlu0 %653, %v648
  %v655 = vpop.permute.xlu0 %654
  %658 = vset.pattern.permute.xlu0 0
  %659 = vperm.xlu0 %658, %v649
  %v660 = vpop.permute.xlu0 %659
  %663 = vset.pattern.permute.xlu0 0
  %664 = vperm.xlu0 %663, %v650
  %v665 = vpop.permute.xlu0 %664
  %668 = vset.pattern.permute.xlu0 0
  %669 = vperm.xlu0 %668, %v651
  %v670 = vpop.permute.xlu0 %669
  %vm672 = vcmask 523264
  %v674 = vsel %vm672, %v642, 0
  %v677 = vsel %vm672, %v643, 0
  %v680 = vsel %vm672, %v644, 0
  %v683 = vsel %vm672, %v645, 0
  %685 = vmatprep.subr.mxu0 0.0
  %686 = vmatpush1.msra.mxu0 0.0
  %687 = vmatprep.subr.mxu0 0.0
  %688 = vmatpush1.msra.mxu0 0.0
  %689 = vmatprep.subr.mxu0 0.0
  %690 = vmatpush1.msra.mxu0 0.0
  %691 = vmatprep.subr.mxu0 0.0
  %692 = vmatpush1.msra.mxu0 0.0
  %693 = vmatprep.subr.mxu0 0.0
  %694 = vmatpush1.msra.mxu0 0.0
  %695 = vmatprep.subr.mxu0 0.0
  %696 = vmatpush1.msra.mxu0 0.0
  %697 = vmatprep.subr.mxu0 0.0
  %698 = vmatpush1.msra.mxu0 0.0
  %699 = vmatprep.subr.mxu0 0.0
  %700 = vmatpush1.msra.mxu0 0.0
  %701 = vmatprep.subr.mxu0 0.0
  %702 = vmatpush1.msra.mxu0 %v647
  %703 = vmatprep.subr.mxu0 0.0
  %704 = vmatpush1.msra.mxu0 %v646
  %705 = vmatprep.subr.mxu0 0.0
  %706 = vmatpush1.msra.mxu0 %v548
  %707 = vmatprep.subr.mxu0 0.0
  %708 = vmatpush1.msra.mxu0 %v547
  %709 = vmatprep.subr.mxu0 0.0
  %710 = vmatpush1.msra.mxu0 %v451
  %711 = vmatprep.subr.mxu0 0.0
  %712 = vmatpush1.msra.mxu0 %v450
  %713 = vmatprep.subr.mxu0 0.0
  %714 = vmatpush1.msra.mxu0 %v354
  %715 = vmatprep.subr.mxu0 0.0
  %716 = vmatpush1.msra.mxu0 %v353
  %717 = vmatprep.subr.mxu0 0.0
  %718 = vmatpush2.msra.mxu0 0.0
  %719 = vmatprep.subr.mxu0 0.0
  %720 = vmatpush2.msra.mxu0 0.0
  %721 = vmatprep.subr.mxu0 0.0
  %722 = vmatpush2.msra.mxu0 0.0
  %723 = vmatprep.subr.mxu0 0.0
  %724 = vmatpush2.msra.mxu0 0.0
  %725 = vmatprep.subr.mxu0 0.0
  %726 = vmatpush2.msra.mxu0 0.0
  %727 = vmatprep.subr.mxu0 0.0
  %728 = vmatpush2.msra.mxu0 0.0
  %729 = vmatprep.subr.mxu0 0.0
  %730 = vmatpush2.msra.mxu0 0.0
  %731 = vmatprep.subr.mxu0 0.0
  %732 = vmatpush2.msra.mxu0 0.0
  %733 = vmatprep.subr.mxu0 0.0
  %734 = vmatpush2.msra.mxu0 0.0
  %735 = vmatprep.subr.mxu0 0.0
  %736 = vmatpush2.msra.mxu0 0.0
  %737 = vmatprep.subr.mxu0 0.0
  %738 = vmatpush2.msra.mxu0 0.0
  %739 = vmatprep.subr.mxu0 0.0
  %740 = vmatpush2.msra.mxu0 0.0
  %741 = vmatprep.subr.mxu0 0.0
  %742 = vmatpush2.msra.mxu0 0.0
  %743 = vmatprep.subr.mxu0 0.0
  %744 = vmatpush2.msra.mxu0 0.0
  %745 = vmatprep.subr.mxu0 0.0
  %746 = vmatpush2.msra.mxu0 0.0
  %747 = vmatprep.subr.mxu0 0.0
  %748 = vmatpush2.msra.mxu0 0.0
  %749 = vmatprep.mubr.f32.mxu0 0.0
  %750 = vmatmul.mubr.f32.gmra.mxu0 %v674
  %v751 = vpop.f32.mrf.mxu0
  %v752 = vadd.f32 %v655, %v751
  %v753 = vpop.f32.mrf.mxu0
  %754 = vmatprep.mubr.f32.mxu0 0.0
  %755 = vmatmul.mubr.f32.gmra.mxu0 %v677
  %v756 = vpop.f32.mrf.mxu0
  %v757 = vadd.f32 %v660, %v756
  %v758 = vpop.f32.mrf.mxu0
  %759 = vmatprep.mubr.f32.mxu0 0.0
  %760 = vmatmul.mubr.f32.gmra.mxu0 %v680
  %v761 = vpop.f32.mrf.mxu0
  %v762 = vadd.f32 %v665, %v761
  %v763 = vpop.f32.mrf.mxu0
  %764 = vmatprep.mubr.f32.mxu0 0.0
  %765 = vmatmul.mubr.f32.gmra.mxu0 %v683
  %v766 = vpop.f32.mrf.mxu0
  %v767 = vadd.f32 %v670, %v766
  %v768 = vpop.f32.mrf.mxu0
  %769 = vdwg.mxu0
  %770 = vst [vmem:[%s16] sm:$0xff] %v752
  %771 = vst [vmem:[%s16 + $0x8] sm:$0xff] %v757
  %772 = vst [vmem:[%s16 + $0x10] sm:$0xff] %v762
  %773 = vst [vmem:[%s16 + $0x18] sm:$0xff] %v767
  // Predicated region
  $region66: #{cell_forward.1} parent=0 // pred_check
    _
  $region67: #{cell_forward.1} parent=0 // pred_check_branch
    %775 = sbr.rel (0) target = $region69
  $region68: #{cell_forward.1} parent=0 // pred_region
    _
  $region69: #{cell_forward.1} parent=0 // pred_fallthru
    _
  // Predicated region
  $region70: #{cell_forward.1} parent=0 // pred_check
    _
  $region71: #{cell_forward.1} parent=0 // pred_check_branch
    %777 = sbr.rel (0) target = $region73
  $region72: #{cell_forward.1} parent=0 // pred_region
    _
  $region73: #{cell_forward.1} parent=0 // pred_fallthru
    _

</llo_original>
